<compile_context>
chip_gen: v6e
topology: v6e:2x2x1
jax: 0.10.0
libtpu: 0.0.40
codegen_flags: <defaults>
</compile_context>

<pallas_src>
import jax
import jax.numpy as jnp
from jax.experimental import pallas as pl
from jax.experimental.pallas import tpu as pltpu


def _round_up(v, m):
    return ((v + m - 1) // m) * m


def _cdiv(a, b):
    return -(-a // b)


def _scaling_kernel(scale_ref, x_ref, o_ref):
    # scale_ref: VMEM, (TR, 1)  per-row scale (compute dtype), broadcast on lanes
    # x_ref    : VMEM, (TR, TC) lane-dense tile of the flattened input (x dtype)
    # o_ref    : VMEM, (TR, TC) output tile (compute dtype)
    o_ref[...] = x_ref[...].astype(o_ref.dtype) * scale_ref[...]


def scaling_forward(x, scale, *, tr_target=512, tc_target=2048, donate_input=False):
    """y = scale * x with scale of shape (1, C, 1, 1), x of shape (N, C, H, W)."""
    N, C, H, W = x.shape
    R, L = N * C, H * W

    # Compute/output dtype follows PyTorch promotion (f32 scale * bf16 x -> f32).
    out_dtype = jnp.result_type(x.dtype, scale.dtype)

    # Lane-dense 2D view + per-row scale column (one-time layout plumbing).
    x2 = x.reshape(R, L)
    scale_rows = jnp.broadcast_to(
        scale.reshape(C).astype(out_dtype)[None, :], (N, C)
    ).reshape(R, 1)

    # Dtype-aware sublane multiple: f32 -> 8, bf16/f16 -> 16, int8/fp8 -> 32.
    sub = max(8, 32 // jnp.dtype(x.dtype).itemsize)
    tr_target = _round_up(max(tr_target, sub), sub)
    tc_target = _round_up(max(tc_target, 128), 128)

    # Tile selection: full-extent blocks when the axis fits in one tile (always
    # legal, even for non-8/128-multiple extents), otherwise aligned tiles with
    # a cdiv grid whose ragged edge tiles Pallas masks — no wrapper pad/slice.
    TR = R if R <= tr_target else tr_target
    TC = L if L <= tc_target else tc_target

    # Guarantee >=2 grid steps for mid-size inputs so v7x can shard the
    # "parallel" axes across its 2 TensorCores (tiny arrays stay single-step).
    if _cdiv(R, TR) == 1 and _cdiv(L, TC) == 1 and R >= 2 * sub:
        TR = _round_up(_cdiv(R, 2), sub)

    grid = (_cdiv(R, TR), _cdiv(L, TC))

    extra_kwargs = {}
    if donate_input and x.dtype == out_dtype:
        # x2 is input #1 (after scale_rows); aliasing avoids a second full-size
        # HBM buffer when the caller donates x.
        extra_kwargs["input_output_aliases"] = {1: 0}

    y2 = pl.pallas_call(
        _scaling_kernel,
        out_shape=jax.ShapeDtypeStruct((R, L), out_dtype),
        grid_spec=pltpu.PrefetchScalarGridSpec(
            num_scalar_prefetch=0,
            grid=grid,
            in_specs=[
                # Per-row scale column; block index constant across column steps.
                pl.BlockSpec((TR, 1), lambda i, j: (i, 0)),
                # Lane-dense data tile.
                pl.BlockSpec((TR, TC), lambda i, j: (i, j)),
            ],
            out_specs=pl.BlockSpec((TR, TC), lambda i, j: (i, j)),
        ),
        compiler_params=pltpu.CompilerParams(
            # Both axes independent -> shard across v7x's 2 TCs; neutral on
            # single-TC v5e/v6e.
            dimension_semantics=("parallel", "parallel"),
            # ~4 MiB tiles double-buffered (x + y + scale) exceed v5e's 16 MiB
            # scoped-VMEM default; 32 MiB is safe on every generation.
            vmem_limit_bytes=32 * 1024 * 1024,
        ),
        **extra_kwargs,
    )(scale_rows, x2)

    return y2.reshape(N, C, H, W)


class ScalingPallas:
    """Mirror of the PyTorch module: scale = ones([1, C, 1, 1]) * biasic_rate."""

    def __init__(self, num_features, biasic_rate=1):
        self.scale = jnp.ones((1, num_features, 1, 1), dtype=jnp.float32) * biasic_rate

    def __call__(self, x):
        return scaling_forward(x, self.scale)


if __name__ == "__main__":
    key = jax.random.PRNGKey(0)
    k1, k2, k3, k4 = jax.random.split(key, 4)

    # 1) basic lane-aligned case (H*W = 256)
    x = jax.random.normal(k1, (2, 4, 16, 16), dtype=jnp.float32)
    m = ScalingPallas(num_features=4, biasic_rate=1)
    y = jax.block_until_ready(m(x))
    y_ref = m.scale * x
    assert y.shape == x.shape and y.dtype == y_ref.dtype
    assert jnp.allclose(y, y_ref, atol=1e-6, rtol=1e-6)

    # 2) non-128-multiple spatial size (H*W = 196): full-extent lane block, no pad
    x = jax.random.normal(k2, (2, 4, 14, 14), dtype=jnp.float32)
    m = ScalingPallas(num_features=4, biasic_rate=2)
    y = jax.block_until_ready(m(x))
    assert jnp.allclose(y, m.scale * x, atol=1e-6, rtol=1e-6)

    # 3) row-band split path (grid rows >= 2) with non-aligned lane extent (400)
    x = jax.random.normal(k3, (2, 8, 20, 20), dtype=jnp.float32)
    m = ScalingPallas(num_features=8, biasic_rate=0.5)
    y = jax.block_until_ready(m(x))
    assert jnp.allclose(y, m.scale * x, atol=1e-6, rtol=1e-6)

    # 4) ragged column-tile edge (H*W = 2304 > 2048) + bf16 input
    #    (promotes to f32, matching torch's f32-parameter * bf16-input result)
    x = jax.random.normal(k4, (1, 2, 48, 48), dtype=jnp.bfloat16)
    m = ScalingPallas(num_features=2, biasic_rate=3)
    y = jax.block_until_ready(m(x))
    y_ref = m.scale * x
    assert y.dtype == y_ref.dtype == jnp.float32
    assert jnp.allclose(y, y_ref, atol=1e-6, rtol=1e-6)

    print("KERNEL_OK")
</pallas_src>

<mosaic_0001>
module attributes {stable_mosaic.version = 11 : i64} {
  func.func @_scaling_kernel(%arg0: i32, %arg1: i32, %arg2: memref<8x1xf32, #tpu.memory_space<vmem>>, %arg3: memref<8x256xf32, #tpu.memory_space<vmem>>, %arg4: memref<8x256xf32, #tpu.memory_space<vmem>>) attributes {dimension_semantics = [#tpu.dimension_semantics<parallel>, #tpu.dimension_semantics<parallel>], iteration_bounds = array<i64: 1, 1>, scalar_prefetch = 0 : i64, scratch_operands = 0 : i64, tpu.core_type = #tpu.core_type<tc>, window_params = [{transform_indices = @transform_0, window_bounds = array<i64: 8, 1>}, {transform_indices = @transform_1, window_bounds = array<i64: 8, 256>}, {transform_indices = @transform_2, window_bounds = array<i64: 8, 256>}]} {
    %c0 = arith.constant 0 : index
    %c0_0 = arith.constant 0 : index
    %0 = vector.load %arg3[%c0, %c0_0] : memref<8x256xf32, #tpu.memory_space<vmem>>, vector<8x256xf32>
    %c0_1 = arith.constant 0 : index
    %c0_2 = arith.constant 0 : index
    %1 = vector.load %arg2[%c0_1, %c0_2] : memref<8x1xf32, #tpu.memory_space<vmem>>, vector<8x1xf32>
    %2 = vector.broadcast %1 : vector<8x1xf32> to vector<8x256xf32>
    %3 = arith.mulf %0, %2 : vector<8x256xf32>
    %c0_3 = arith.constant 0 : index
    %c0_4 = arith.constant 0 : index
    %4 = vector.load %arg4[%c0_3, %c0_4] : memref<8x256xf32, #tpu.memory_space<vmem>>, vector<8x256xf32>
    tpu.vector_store %arg4[%c0_3, %c0_4], %3 {strides = array<i32>} : memref<8x256xf32, #tpu.memory_space<vmem>>, vector<8x256xf32>,
    return
  }
  func.func @transform_0(%arg0: i32, %arg1: i32) -> (i32, i32) {
    %c0_i32 = arith.constant 0 : i32
    %c0_i32_0 = arith.constant 0 : i32
    return %arg0, %c0_i32 : i32, i32
  }
  func.func @transform_1(%arg0: i32, %arg1: i32) -> (i32, i32) {
    %c0_i32 = arith.constant 0 : i32
    return %arg0, %arg1 : i32, i32
  }
  func.func @transform_2(%arg0: i32, %arg1: i32) -> (i32, i32) {
    %c0_i32 = arith.constant 0 : i32
    return %arg0, %arg1 : i32, i32
  }
}

</mosaic_0001>

<llo_original>
// kernel: tpu_custom_call.1
$region0: #{tpu_custom_call.1}
  #allocation0 [shape = 'u32[]', space=smem, size = 0x4, offset = 0x4, fixed_abs, tag = 'smem constant byte address 0x4 - core index']
  #allocation1 [shape = 'u32[144,128]{1,0:T(1,128)}', space=vmem, size = 0x12000, scoped, tag = 'internal scratch']
  %s0 = inlined_call_operand.vmem [shape: f32[8,1], index: 0, kind: input, shape index: {}]
  %s1 = inlined_call_operand.hbm [shape: f32[8,256], index: 1, kind: input, shape index: {}]
  %s2 = inlined_call_operand.hbm [shape: f32[8,256], index: 2, kind: output, shape index: {}]
  %s3 = sld [smem:[#allocation0]]
  $region22: #{tpu_custom_call.1} parent=0
    _
  %s5 = ssub.s32 1, %s3
  %s6 = scalar_select 0, %s5, %s3
  $region1: #{tpu_custom_call.1} parent=0
    #allocation2 [shape = 'u8[8192]{0}', space=vmem, size = 0x2000, scoped, tag = 'input window, operand 1, single buffered']
    #allocation3 [shape = 's32[1]{0}', space=sflag, size = 0x4, scoped, tag = 'scoped memory for tpu_custom_call.1']
    #allocation4 [shape = 's32[1]{0}', space=sflag, size = 0x4, scoped, tag = 'scoped memory for tpu_custom_call.1']
    #allocation5 [shape = 'u8[8192]{0}', space=vmem, size = 0x2000, scoped, tag = 'output window, operand 0, single buffered']
    %7 = vsyncpa [#allocation3], 0
    %8 = vsyncpa [#allocation4], 0
    // Predicated region
    $region2: #{tpu_custom_call.1} parent=1 // pred_check
      _
    $region3: #{tpu_custom_call.1} parent=1 // pred_check_branch
      %10 = sbr.rel (0) target = $region5
    $region4: #{tpu_custom_call.1} parent=1 // pred_region
      _
    $region5: #{tpu_custom_call.1} parent=1 // pred_fallthru
      _
    // Predicated region
    $region6: #{tpu_custom_call.1} parent=1 // pred_check
      _
    $region7: #{tpu_custom_call.1} parent=1 // pred_check_branch
      %12 = sbr.rel (0) target = $region9
    $region8: #{tpu_custom_call.1} parent=1 // pred_region
      %s14 = ssub.s32 256, 256
      %15 = vsyncadd [#allocation3], %s14
      %s17 = sshll.u32 [#allocation2], 4
      %s18 = int_to_ptr.vmem [resolvable:$true] %s17
      %20 = dma.hbm_to_vmem [thread:$0]  %s1, 256, %s18, [#allocation3]
    $region9: #{tpu_custom_call.1} parent=1 // pred_fallthru
      _
    // Predicated region
    $region10: #{tpu_custom_call.1} parent=1 // pred_check
      _
    $region11: #{tpu_custom_call.1} parent=1 // pred_check_branch
      %22 = sbr.rel (0) target = $region13
    $region12: #{tpu_custom_call.1} parent=1 // pred_region
      %23 = dma.done [#allocation3], 256
    $region13: #{tpu_custom_call.1} parent=1 // pred_fallthru
      _
    %v24 = vld [vmem:[#allocation2] sm:$0xff]
    %v25 = vld [vmem:[#allocation2 + $0x8] sm:$0xff]
    %v26 = vld [vmem:[%s0] sm:$0xff]
    %28 = vset.pattern.permute.xlu0 0
    %29 = vperm.xlu0 %28, %v26
    %v30 = vpop.permute.xlu0 %29
    %v32 = vmul.f32 %v24, %v30
    %v33 = vmul.f32 %v25, %v30
    %34 = vst [vmem:[#allocation5] sm:$0xff] %v32
    %35 = vst [vmem:[#allocation5 + $0x8] sm:$0xff] %v33
    // Predicated region
    $region14: #{tpu_custom_call.1} parent=1 // pred_check
      _
    $region15: #{tpu_custom_call.1} parent=1 // pred_check_branch
      %37 = sbr.rel (0) target = $region17
    $region16: #{tpu_custom_call.1} parent=1 // pred_region
      %s39 = ssub.s32 256, 256
      %40 = vsyncadd [#allocation4], %s39
      %s42 = sshll.u32 [#allocation5], 4
      %s43 = int_to_ptr.vmem [resolvable:$true] %s42
      %45 = dma.vmem_to_hbm [thread:$0]  %s43, 256, %s2, [#allocation4]
    $region17: #{tpu_custom_call.1} parent=1 // pred_fallthru
      _
    // Predicated region
    $region18: #{tpu_custom_call.1} parent=1 // pred_check
      _
    $region19: #{tpu_custom_call.1} parent=1 // pred_check_branch
      %47 = sbr.rel (0) target = $region21
    $region20: #{tpu_custom_call.1} parent=1 // pred_region
      %48 = dma.done [#allocation4], 256
    $region21: #{tpu_custom_call.1} parent=1 // pred_fallthru
      _
    %49 = vsyncpa [#allocation3], 1
    %50 = vsyncpa [#allocation4], 1

</llo_original>
